<compile_context>
chip_gen: v7x
topology: tpu7x:2x2x1
jax: 0.10.0
libtpu: 0.0.40
codegen_flags: <defaults>
</compile_context>

<pallas_src>
import jax
import jax.numpy as jnp
from jax import lax
from jax.experimental import pallas as pl
from jax.experimental.pallas import tpu as pltpu

POOL_K = 5                      # cascaded 5x5 pools: 5 -> 9 -> 13
PAD = (POOL_K - 1) // 2         # 2
NUM_BRANCHES = 4                # identity + 3 pooled branches


def _neg_fill(dtype):
    """Padding value matching PyTorch max_pool2d semantics."""
    if jnp.issubdtype(dtype, jnp.floating):
        return jnp.array(-jnp.inf, dtype)
    return jnp.array(jnp.iinfo(dtype).min, dtype)


def _tree_max(vals):
    """Balanced-tree maximum (depth ceil(log2 k) instead of k-1)."""
    while len(vals) > 1:
        nxt = [jnp.maximum(vals[i], vals[i + 1]) for i in range(0, len(vals) - 1, 2)]
        if len(vals) % 2:
            nxt.append(vals[-1])
        vals = nxt
    return vals[0]


def _pool_h(t):
    """Stride-1 k=5 max pool along axis 1 (H = sublane axis) of a (TC, H, W) tile.

    Sublane-axis concat + shifted slices: cheap and proven to lower cleanly."""
    H = t.shape[1]
    neg = jnp.full((t.shape[0], PAD, t.shape[2]), _neg_fill(t.dtype), t.dtype)
    tp = jnp.concatenate([neg, t, neg], axis=1)
    return _tree_max([lax.slice_in_dim(tp, d, d + H, axis=1) for d in range(POOL_K)])


def _pool_w(t):
    """Stride-1 k=5 max pool along axis 2 (W = 128-lane axis) of a (TC, H, W) tile.

    XLU lane rolls + iota boundary masks: no -inf pad buffer, no concat copy on the
    lane axis (review feedback).  Rolling the lane-iota alongside the data and
    masking on |src - dst| <= PAD makes this independent of the roll sign
    convention and harmless under wraparound for any W."""
    W = t.shape[2]
    neg = _neg_fill(t.dtype)
    lane = lax.broadcasted_iota(jnp.int32, t.shape, 2)
    parts = [t]
    for d in range(1, PAD + 1):
        for s in (d, W - d):               # the +d and -d shifts (W-d == roll by -d)
            if s % W == 0:                 # degenerate tiny-W case: identical to t
                continue
            r = pltpu.roll(t, shift=s, axis=2)
            src = pltpu.roll(lane, shift=s, axis=2)
            valid = jnp.abs(src - lane) <= PAD
            parts.append(jnp.where(valid, r, neg))
    return _tree_max(parts)


def _pool5x5(t):
    """Separable 5x5 stride-1 max pool on a (TC, H, W) tile."""
    return _pool_w(_pool_h(t))


def spp_kernel(x_ref, o_ref, cur_ref):
    # x_ref:   (1, TC, H, W)  input channel block (same block for all 4 branch steps)
    # o_ref:   (1, TC, H, W)  output block at channel offset (b*C + c*TC)
    # cur_ref: (TC, H, W)     cascade carry across the branch grid axis
    b = pl.program_id(2)

    @pl.when(b == 0)
    def _():                               # identity branch: out[:, 0:C] = x
        x = x_ref[0]
        cur_ref[...] = x
        o_ref[0, :, :, :] = x

    @pl.when(b != 0)
    def _():                               # pool5^b(x): pool5, pool9, pool13
        pooled = _pool5x5(cur_ref[...])
        cur_ref[...] = pooled
        o_ref[0, :, :, :] = pooled


def _pick_channel_tile(C, H, W, itemsize, vmem_budget=20 * 1024 * 1024):
    """Channel tile: fits a v7x-safe VMEM budget, TC <= 128 for enough grid steps,
    and (when possible) >= 2 channel blocks so the "parallel" axes have enough
    slices for pipeline overlap + v7x megacore sharding."""
    hp = ((H + 7) // 8) * 8                # sublane padding of a VMEM tile
    wp = ((W + 127) // 128) * 128          # lane padding of a VMEM tile
    # ~11 tile-sized live buffers: 2x double-buffered in, 2x double-buffered out,
    # 1 cascade scratch, ~6 transient pooling temporaries.
    def fits(tc):
        return 11 * tc * hp * wp * itemsize <= vmem_budget

    divisors = [d for d in range(1, C + 1) if C % d == 0]
    good = [d for d in divisors if d <= 128 and fits(d)]
    if good:
        tc = max(good)
        smaller = [d for d in good if d < C]
        if tc == C and smaller:            # prefer >= 2 channel blocks
            tc = max(smaller)
        return tc
    fallback = [d for d in divisors if fits(d)]
    return max(fallback) if fallback else 1


def spp(x, *, channel_tile=None):
    """SPP forward. x: (N, C, H, W) -> (N, 4C, H, W), matching the PyTorch module."""
    N, C, H, W = x.shape
    itemsize = jnp.dtype(x.dtype).itemsize
    TC = channel_tile if channel_tile is not None else _pick_channel_tile(C, H, W, itemsize)
    assert C % TC == 0, (C, TC)
    num_cb = C // TC

    cost = pl.CostEstimate(
        flops=24 * N * C * H * W,                                   # 3 x (8 max/elt)
        transcendentals=0,
        bytes_accessed=(1 + NUM_BRANCHES) * N * C * H * W * itemsize,  # 1x read + 4x write
    )

    return pl.pallas_call(
        spp_kernel,
        out_shape=jax.ShapeDtypeStruct((N, NUM_BRANCHES * C, H, W), x.dtype),
        grid_spec=pltpu.PrefetchScalarGridSpec(
            num_scalar_prefetch=0,
            grid=(N, num_cb, NUM_BRANCHES),           # branch axis innermost (cascade)
            in_specs=[
                # Same input block for all 4 branch steps -> fetched once per (n, c).
                pl.BlockSpec((1, TC, H, W), lambda n, c, b: (n, c, 0, 0)),
            ],
            # Write each branch directly at its torch.cat(dim=1) channel offset:
            # out channels [b*C + c*TC : b*C + (c+1)*TC]  ==  block (b*num_cb + c).
            out_specs=pl.BlockSpec((1, TC, H, W),
                                   lambda n, c, b: (n, b * num_cb + c, 0, 0)),
            scratch_shapes=[pltpu.VMEM((TC, H, W), x.dtype)],
        ),
        compiler_params=pltpu.CompilerParams(
            dimension_semantics=("parallel", "parallel", "arbitrary"),
            vmem_limit_bytes=32 * 1024 * 1024,        # v7x-safe (64 MiB physical)
        ),
        cost_estimate=cost,
    )(x)


def spp_reference(x):
    """Pure-JAX reference matching torch.nn.functional.max_pool2d semantics."""
    init = _neg_fill(x.dtype)
    outs = [x]
    for k in (5, 9, 13):
        p = (k - 1) // 2
        outs.append(lax.reduce_window(
            x, init, lax.max,
            window_dimensions=(1, 1, k, k),
            window_strides=(1, 1, 1, 1),
            padding=((0, 0), (0, 0), (p, p), (p, p)),
        ))
    return jnp.concatenate(outs, axis=1)


if __name__ == "__main__":
    key = jax.random.PRNGKey(0)
    x = jax.random.normal(key, (2, 4, 16, 16), dtype=jnp.float32)

    out = jax.block_until_ready(spp(x))
    ref = spp_reference(x)

    assert out.shape == (2, 16, 16, 16), out.shape
    assert out.dtype == x.dtype
    assert jnp.allclose(out, ref), "Pallas SPP mismatch vs reference"
    print("KERNEL_OK")
</pallas_src>

<mosaic_0001>
module attributes {stable_mosaic.version = 11 : i64} {
  func.func @spp_kernel(%arg0: i32, %arg1: i32, %arg2: i32, %arg3: memref<1x2x16x16xf32, #tpu.memory_space<vmem>>, %arg4: memref<1x2x16x16xf32, #tpu.memory_space<vmem>>, %arg5: memref<2x16x16xf32, #tpu.memory_space<vmem>>) attributes {dimension_semantics = [#tpu.dimension_semantics<parallel>, #tpu.dimension_semantics<parallel>, #tpu.dimension_semantics<arbitrary>], iteration_bounds = array<i64: 2, 2, 4>, scalar_prefetch = 0 : i64, scratch_operands = 1 : i64, tpu.core_type = #tpu.core_type<tc>, window_params = [{transform_indices = @transform_0, window_bounds = array<i64: 1, 2, 16, 16>}, {transform_indices = @transform_1, window_bounds = array<i64: 1, 2, 16, 16>}]} {
    %c0_i32 = arith.constant 0 : i32
    %0 = arith.cmpi eq, %arg2, %c0_i32 : i32
    %1 = arith.extui %0 : i1 to i32
    %c0_i32_0 = arith.constant 0 : i32
    %2 = arith.cmpi ne, %1, %c0_i32_0 : i32
    scf.if %2 {
      %c0 = arith.constant 0 : index
      %c0_3 = arith.constant 0 : index
      %c0_4 = arith.constant 0 : index
      %c0_5 = arith.constant 0 : index
      %6 = vector.load %arg3[%c0, %c0_3, %c0_4, %c0_5] : memref<1x2x16x16xf32, #tpu.memory_space<vmem>>, vector<1x2x16x16xf32>
      %7 = vector.shape_cast %6 : vector<1x2x16x16xf32> to vector<2x16x16xf32>
      %c0_6 = arith.constant 0 : index
      %c0_7 = arith.constant 0 : index
      %c0_8 = arith.constant 0 : index
      %8 = vector.load %arg5[%c0_6, %c0_7, %c0_8] : memref<2x16x16xf32, #tpu.memory_space<vmem>>, vector<2x16x16xf32>
      tpu.vector_store %arg5[%c0_6, %c0_7, %c0_8], %7 {strides = array<i32>} : memref<2x16x16xf32, #tpu.memory_space<vmem>>, vector<2x16x16xf32>,
      %c0_9 = arith.constant 0 : index
      %c0_10 = arith.constant 0 : index
      %c0_11 = arith.constant 0 : index
      %c0_12 = arith.constant 0 : index
      %9 = vector.load %arg4[%c0_9, %c0_10, %c0_11, %c0_12] : memref<1x2x16x16xf32, #tpu.memory_space<vmem>>, vector<1x2x16x16xf32>
      %10 = vector.shape_cast %9 : vector<1x2x16x16xf32> to vector<2x16x16xf32>
      %11 = vector.shape_cast %7 : vector<2x16x16xf32> to vector<1x2x16x16xf32>
      tpu.vector_store %arg4[%c0_9, %c0_10, %c0_11, %c0_12], %11 {strides = array<i32>} : memref<1x2x16x16xf32, #tpu.memory_space<vmem>>, vector<1x2x16x16xf32>,
    } else {
    }
    %c0_i32_1 = arith.constant 0 : i32
    %3 = arith.cmpi ne, %arg2, %c0_i32_1 : i32
    %4 = arith.extui %3 : i1 to i32
    %c0_i32_2 = arith.constant 0 : i32
    %5 = arith.cmpi ne, %4, %c0_i32_2 : i32
    scf.if %5 {
      %c0 = arith.constant 0 : index
      %c0_3 = arith.constant 0 : index
      %c0_4 = arith.constant 0 : index
      %6 = vector.load %arg5[%c0, %c0_3, %c0_4] : memref<2x16x16xf32, #tpu.memory_space<vmem>>, vector<2x16x16xf32>
      %cst = arith.constant 0xFF800000 : f32
      %7 = vector.broadcast %cst : f32 to vector<2x2x16xf32>
      %8 = tpu.concatenate %7, %6, %7 in 1 : vector<2x2x16xf32>, vector<2x16x16xf32>, vector<2x2x16xf32> -> vector<2x20x16xf32>
      %9 = vector.extract_strided_slice %8 {offsets = [0, 0, 0], sizes = [2, 16, 16], strides = [1, 1, 1]} : vector<2x20x16xf32> to vector<2x16x16xf32>
      %10 = vector.extract_strided_slice %8 {offsets = [0, 1, 0], sizes = [2, 16, 16], strides = [1, 1, 1]} : vector<2x20x16xf32> to vector<2x16x16xf32>
      %11 = vector.extract_strided_slice %8 {offsets = [0, 2, 0], sizes = [2, 16, 16], strides = [1, 1, 1]} : vector<2x20x16xf32> to vector<2x16x16xf32>
      %12 = vector.extract_strided_slice %8 {offsets = [0, 3, 0], sizes = [2, 16, 16], strides = [1, 1, 1]} : vector<2x20x16xf32> to vector<2x16x16xf32>
      %13 = vector.extract_strided_slice %8 {offsets = [0, 4, 0], sizes = [2, 16, 16], strides = [1, 1, 1]} : vector<2x20x16xf32> to vector<2x16x16xf32>
      %14 = arith.maximumf %9, %10 : vector<2x16x16xf32>
      %15 = arith.maximumf %11, %12 : vector<2x16x16xf32>
      %16 = arith.maximumf %14, %15 : vector<2x16x16xf32>
      %17 = arith.maximumf %16, %13 : vector<2x16x16xf32>
      %18 = tpu.iota {dimensions = array<i32: 2>} : vector<2x16x16xi32>
      %c1_i32 = arith.constant 1 : i32
      %19 = tpu.dynamic_rotate %17 by %c1_i32 dim 2 : vector<2x16x16xf32>, i32 -> vector<2x16x16xf32>
      %c1_i32_5 = arith.constant 1 : i32
      %20 = tpu.dynamic_rotate %18 by %c1_i32_5 dim 2 : vector<2x16x16xi32>, i32 -> vector<2x16x16xi32>
      %21 = arith.subi %20, %18 : vector<2x16x16xi32>
      %22 = math.absi %21 : vector<2x16x16xi32>
      %c2_i32 = arith.constant 2 : i32
      %23 = vector.broadcast %c2_i32 : i32 to vector<2x16x16xi32>
      %24 = arith.cmpi sle, %22, %23 : vector<2x16x16xi32>
      %cst_6 = arith.constant 0xFF800000 : f32
      %25 = vector.broadcast %cst_6 : f32 to vector<2x16x16xf32>
      %26 = arith.select %24, %19, %25 : vector<2x16x16xi1>, vector<2x16x16xf32>
      %c15_i32 = arith.constant 15 : i32
      %27 = tpu.dynamic_rotate %17 by %c15_i32 dim 2 : vector<2x16x16xf32>, i32 -> vector<2x16x16xf32>
      %c15_i32_7 = arith.constant 15 : i32
      %28 = tpu.dynamic_rotate %18 by %c15_i32_7 dim 2 : vector<2x16x16xi32>, i32 -> vector<2x16x16xi32>
      %29 = arith.subi %28, %18 : vector<2x16x16xi32>
      %30 = math.absi %29 : vector<2x16x16xi32>
      %c2_i32_8 = arith.constant 2 : i32
      %31 = vector.broadcast %c2_i32_8 : i32 to vector<2x16x16xi32>
      %32 = arith.cmpi sle, %30, %31 : vector<2x16x16xi32>
      %cst_9 = arith.constant 0xFF800000 : f32
      %33 = vector.broadcast %cst_9 : f32 to vector<2x16x16xf32>
      %34 = arith.select %32, %27, %33 : vector<2x16x16xi1>, vector<2x16x16xf32>
      %c2_i32_10 = arith.constant 2 : i32
      %35 = tpu.dynamic_rotate %17 by %c2_i32_10 dim 2 : vector<2x16x16xf32>, i32 -> vector<2x16x16xf32>
      %c2_i32_11 = arith.constant 2 : i32
      %36 = tpu.dynamic_rotate %18 by %c2_i32_11 dim 2 : vector<2x16x16xi32>, i32 -> vector<2x16x16xi32>
      %37 = arith.subi %36, %18 : vector<2x16x16xi32>
      %38 = math.absi %37 : vector<2x16x16xi32>
      %c2_i32_12 = arith.constant 2 : i32
      %39 = vector.broadcast %c2_i32_12 : i32 to vector<2x16x16xi32>
      %40 = arith.cmpi sle, %38, %39 : vector<2x16x16xi32>
      %cst_13 = arith.constant 0xFF800000 : f32
      %41 = vector.broadcast %cst_13 : f32 to vector<2x16x16xf32>
      %42 = arith.select %40, %35, %41 : vector<2x16x16xi1>, vector<2x16x16xf32>
      %c14_i32 = arith.constant 14 : i32
      %43 = tpu.dynamic_rotate %17 by %c14_i32 dim 2 : vector<2x16x16xf32>, i32 -> vector<2x16x16xf32>
      %c14_i32_14 = arith.constant 14 : i32
      %44 = tpu.dynamic_rotate %18 by %c14_i32_14 dim 2 : vector<2x16x16xi32>, i32 -> vector<2x16x16xi32>
      %45 = arith.subi %44, %18 : vector<2x16x16xi32>
      %46 = math.absi %45 : vector<2x16x16xi32>
      %c2_i32_15 = arith.constant 2 : i32
      %47 = vector.broadcast %c2_i32_15 : i32 to vector<2x16x16xi32>
      %48 = arith.cmpi sle, %46, %47 : vector<2x16x16xi32>
      %cst_16 = arith.constant 0xFF800000 : f32
      %49 = vector.broadcast %cst_16 : f32 to vector<2x16x16xf32>
      %50 = arith.select %48, %43, %49 : vector<2x16x16xi1>, vector<2x16x16xf32>
      %51 = arith.maximumf %17, %26 : vector<2x16x16xf32>
      %52 = arith.maximumf %34, %42 : vector<2x16x16xf32>
      %53 = arith.maximumf %51, %52 : vector<2x16x16xf32>
      %54 = arith.maximumf %53, %50 : vector<2x16x16xf32>
      %c0_17 = arith.constant 0 : index
      %c0_18 = arith.constant 0 : index
      %c0_19 = arith.constant 0 : index
      %55 = vector.load %arg5[%c0_17, %c0_18, %c0_19] : memref<2x16x16xf32, #tpu.memory_space<vmem>>, vector<2x16x16xf32>
      tpu.vector_store %arg5[%c0_17, %c0_18, %c0_19], %54 {strides = array<i32>} : memref<2x16x16xf32, #tpu.memory_space<vmem>>, vector<2x16x16xf32>,
      %c0_20 = arith.constant 0 : index
      %c0_21 = arith.constant 0 : index
      %c0_22 = arith.constant 0 : index
      %c0_23 = arith.constant 0 : index
      %56 = vector.load %arg4[%c0_20, %c0_21, %c0_22, %c0_23] : memref<1x2x16x16xf32, #tpu.memory_space<vmem>>, vector<1x2x16x16xf32>
      %57 = vector.shape_cast %56 : vector<1x2x16x16xf32> to vector<2x16x16xf32>
      %58 = vector.shape_cast %54 : vector<2x16x16xf32> to vector<1x2x16x16xf32>
      tpu.vector_store %arg4[%c0_20, %c0_21, %c0_22, %c0_23], %58 {strides = array<i32>} : memref<1x2x16x16xf32, #tpu.memory_space<vmem>>, vector<1x2x16x16xf32>,
    } else {
    }
    return
  }
  func.func @transform_0(%arg0: i32, %arg1: i32, %arg2: i32) -> (i32, i32, i32, i32) {
    %c0_i32 = arith.constant 0 : i32
    %c0_i32_0 = arith.constant 0 : i32
    %c0_i32_1 = arith.constant 0 : i32
    return %arg0, %arg1, %c0_i32, %c0_i32_0 : i32, i32, i32, i32
  }
  func.func @transform_1(%arg0: i32, %arg1: i32, %arg2: i32) -> (i32, i32, i32, i32) {
    %c2_i32 = arith.constant 2 : i32
    %0 = arith.muli %arg2, %c2_i32 : i32
    %1 = arith.addi %0, %arg1 : i32
    %c0_i32 = arith.constant 0 : i32
    %c0_i32_0 = arith.constant 0 : i32
    %c0_i32_1 = arith.constant 0 : i32
    return %arg0, %1, %c0_i32, %c0_i32_0 : i32, i32, i32, i32
  }
}

</mosaic_0001>

<llo_original>
// kernel: tpu_custom_call.1
$region0: #{tpu_custom_call.1}
  #allocation0 [shape = 'u32[]', space=smem, size = 0x4, offset = 0x4, fixed_abs, tag = 'smem constant byte address 0x4 - core index']
  #allocation1 [shape = 'u32[144,128]{1,0:T(1,128)}', space=vmem, size = 0x12000, scoped, tag = 'internal scratch']
  #allocation2 [shape = 'f32[2,16,16]{2,1,0:T(8,128)}', space=vmem, size = 0x4000, scoped, tag = 'scratch operand']
  %s0 = inlined_call_operand.hbm [shape: f32[2,4,16,16], index: 0, kind: input, shape index: {}]
  %s1 = inlined_call_operand.hbm [shape: f32[2,16,16,16], index: 1, kind: output, shape index: {}]
  %s2 = sld [smem:[#allocation0]]
  $region49: #{tpu_custom_call.1} parent=0
    _
  %s4 = ssub.s32 1, %s2
  %s5 = scalar_select 0, %s4, %s2
  $region1: #{tpu_custom_call.1} parent=0
    #allocation3 [shape = 'u8[32768]{0}', space=vmem, size = 0x8000, scoped, tag = 'input window, operand 0']
    #allocation4 [shape = 's32[2]{0}', space=sflag, size = 0x8, scoped, tag = 'scoped memory for tpu_custom_call.1']
    #allocation5 [shape = 's32[2]{0}', space=sflag, size = 0x8, scoped, tag = 'scoped memory for tpu_custom_call.1']
    #allocation6 [shape = 'u8[32768]{0}', space=vmem, size = 0x8000, scoped, tag = 'output window, operand 0']
    %6 = vsyncpa [#allocation4], 0
    %s7 = scalar_lea.sflag [#allocation4], 1
    %8 = vsyncpa %s7, 0
    %9 = vsyncpa [#allocation5], 0
    %s10 = scalar_lea.sflag [#allocation5], 1
    %11 = vsyncpa %s10, 0
    loop: start=0, step=1, limit=18
    $region2: #{tpu_custom_call.1} parent=1 // loop_pre_header
      _
    $region3: #{tpu_custom_call.1} parent=1 // loop_header
      %s13 = sphi 0, %s17
      %p14 = scmp.ge.s32.totalorder %s13, 18
      %s20 = sphi 0, %s39
      %s21 = sphi 0, %s35
      %s22 = sphi 0, %s31
      %s23 = sphi 0, %s20
      %s24 = sphi 0, %s21
      %s25 = sphi 0, %s22
      %s26 = sphi 0, %s23
      %s27 = sphi 0, %s24
      %s28 = sphi 0, %s25
      %s44 = sphi 0, %s46
      %s47 = sphi 0, %s44
      %s48 = sphi 0, %s47
      %s64 = sphi 0, %s48
      %s76 = sphi 0, %s78
      %s79 = sphi 0, %s76
      %s80 = sphi 0, %s79
      %s96 = sphi 0, %s80
    $region4: #{tpu_custom_call.1} parent=1 // loop_header_branch
      %16 = sbr.rel (%p14) target = $region8
    $region5: #{tpu_custom_call.1} parent=1 // loop_body
      %s18 = ssub.s32 %s13, 1
      %s19 = ssub.s32 %s13, 2
      %s29 = sadd.s32 1, %s22
      %p30 = scmp.ge.s32.totalorder %s29, 4
      %s31 = scalar_select %p30, 0, %s29
      %s32 = sadd.s32 1, %s21
      %s33 = scalar_select %p30, %s32, %s21
      %p34 = scmp.ge.s32.totalorder %s33, 2
      %s35 = scalar_select %p34, 0, %s33
      %s36 = sadd.s32 1, %s20
      %s37 = scalar_select %p34, %s36, %s20
      %p38 = scmp.ge.s32.totalorder %s37, 2
      %s39 = scalar_select %p38, 0, %s37
      %s40 = ssub.s32 %s20, %s39
      %s41 = ssub.s32 %s21, %s35
      %s42 = sor.u32 %s40, %s41
      %p43 = scmp.eq.s32.totalorder %s42, 0
      %s45 = sadd.s32 %s44, 1
      %s46 = scalar_select %p43, %s44, %s45
      %p49 = pneg %p43
      %p50 = scmp.eq.s32.totalorder %s13, 15
      %p51 = por %p49, %p50
      %p52 = scmp.ne.s32.totalorder %s44, %s47
      %p53 = scmp.eq.s32.totalorder %s13, 0
      %p54 = por %p52, %p53
      %p55 = scmp.ne.s32.totalorder %s44, %s47
      %p56 = scmp.eq.s32.totalorder %s18, 15
      %p57 = por %p55, %p56
      %p58 = scmp.ne.s32.totalorder %s47, %s48
      %p59 = scmp.eq.s32.totalorder %s18, 0
      %p60 = por %p58, %p59
      %p61 = scmp.ne.s32.totalorder %s47, %s48
      %p62 = scmp.eq.s32.totalorder %s19, 15
      %p63 = por %p61, %p62
      %p65 = scmp.ne.s32.totalorder %s48, %s64
      %p66 = scmp.eq.s32.totalorder %s19, 0
      %p67 = por %p65, %p66
      %s68 = smul.u32 %s22, 2
      %s69 = sadd.s32 %s68, %s21
      %s70 = smul.u32 %s31, 2
      %s71 = sadd.s32 %s70, %s35
      %s72 = ssub.s32 %s20, %s39
      %s73 = ssub.s32 %s69, %s71
      %s74 = sor.u32 %s72, %s73
      %p75 = scmp.eq.s32.totalorder %s74, 0
      %s77 = sadd.s32 %s76, 1
      %s78 = scalar_select %p75, %s76, %s77
      %p81 = pneg %p75
      %p82 = scmp.eq.s32.totalorder %s13, 15
      %p83 = por %p81, %p82
      %p84 = scmp.ne.s32.totalorder %s76, %s79
      %p85 = scmp.eq.s32.totalorder %s13, 0
      %p86 = por %p84, %p85
      %p87 = scmp.ne.s32.totalorder %s76, %s79
      %p88 = scmp.eq.s32.totalorder %s18, 15
      %p89 = por %p87, %p88
      %p90 = scmp.ne.s32.totalorder %s79, %s80
      %p91 = scmp.eq.s32.totalorder %s18, 0
      %p92 = por %p90, %p91
      %p93 = scmp.ne.s32.totalorder %s79, %s80
      %p94 = scmp.eq.s32.totalorder %s19, 15
      %p95 = por %p93, %p94
      %p97 = scmp.ne.s32.totalorder %s80, %s96
      %p98 = scmp.eq.s32.totalorder %s19, 0
      %p99 = por %p97, %p98
      %p100 = scmp.le.s32.totalorder 1, %s13
      %p101 = scmp.lt.s32.totalorder %s13, 17
      %p102 = pnand %p100, %p101
      %p103 = pneg %p102
      // Predicated region
      $region9: #{tpu_custom_call.1} parent=5 // pred_check
        _
      $region10: #{tpu_custom_call.1} parent=5 // pred_check_branch
        %105 = sbr.rel (%p102) target = $region12
      $region11: #{tpu_custom_call.1} parent=5 // pred_region
        %s106 = ssub.s32 %s13, 1
      $region12: #{tpu_custom_call.1} parent=5 // pred_fallthru
        _
      %p107 = scmp.lt.s32.totalorder %s13, 16
      // Predicated region
      $region13: #{tpu_custom_call.1} parent=5 // pred_check
        %p108 = pneg %p107
      $region14: #{tpu_custom_call.1} parent=5 // pred_check_branch
        %110 = sbr.rel (%p108) target = $region16
      $region15: #{tpu_custom_call.1} parent=5 // pred_region
        // Predicated region
        $region17: #{tpu_custom_call.1} parent=15 // pred_check
          %p111 = pneg %p54
        $region18: #{tpu_custom_call.1} parent=15 // pred_check_branch
          %113 = sbr.rel (%p111) target = $region20
        $region19: #{tpu_custom_call.1} parent=15 // pred_region
          %s114 = sand.u32 %s44, 1
          %s115 = scalar_lea.sflag [#allocation4], %s114
          %s116 = sand.u32 %s44, 1
          %s117 = smul.addr %s116, 32
          %s118 = scalar_lea.vmem [#allocation3], %s117
          %s119 = smul.u32 2, %s21
          %s121 = ssub.s32 512, 512
          %122 = vsyncadd %s115, %s121
          %s123 = smul.addr %s119, 2
          %s124 = smul.addr %s20, 8
          %s125 = sadd.s32 %s123, %s124
          %s126 = smul.addr %s125, 128
          %s127 = scalar_lea.hbm %s0, %s126
          %s128 = sshll.u32 %s118, 4
          %s129 = int_to_ptr.vmem [resolvable:$true] %s128
          %134 = dma.hbm_to_vmem [thread:$0]  %s127, 512, %s129, %s115, 128, 128, 8
        $region20: #{tpu_custom_call.1} parent=15 // pred_fallthru
          _
      $region16: #{tpu_custom_call.1} parent=5 // pred_fallthru
        _
      %p135 = scmp.le.s32.totalorder 1, %s13
      %p136 = scmp.lt.s32.totalorder %s13, 17
      %p137 = pnand %p135, %p136
      %p138 = pneg %p137
      // Predicated region
      $region21: #{tpu_custom_call.1} parent=5 // pred_check
        _
      $region22: #{tpu_custom_call.1} parent=5 // pred_check_branch
        %140 = sbr.rel (%p137) target = $region24
      $region23: #{tpu_custom_call.1} parent=5 // pred_region
        %s141 = ssub.s32 %s13, 1
        %s142 = sand.u32 %s47, 1
        %s143 = scalar_lea.sflag [#allocation4], %s142
        %s144 = sand.u32 %s47, 1
        %s145 = smul.addr %s144, 32
        %s146 = scalar_lea.vmem [#allocation3], %s145
        // Predicated region
        $region25: #{tpu_custom_call.1} parent=23 // pred_check
          %p147 = pneg %p60
        $region26: #{tpu_custom_call.1} parent=23 // pred_check_branch
          %149 = sbr.rel (%p147) target = $region28
        $region27: #{tpu_custom_call.1} parent=23 // pred_region
          %150 = dma.done %s143, 512
        $region28: #{tpu_custom_call.1} parent=23 // pred_fallthru
          _
        %s151 = sand.u32 %s47, 1
        %s152 = scalar_lea.sflag [#allocation4], %s151
        %s153 = sand.u32 %s47, 1
        %s154 = smul.addr %s153, 32
        %s155 = scalar_lea.vmem [#allocation3], %s154
        %p156 = pneg %p60
        %p157 = pneg %p57
        %p158 = pneg %p92
        %p159 = pneg %p89
        %s160 = sand.u32 %s79, 1
        %s161 = scalar_lea.sflag [#allocation5], %s160
        %s162 = sand.u32 %s79, 1
        %s163 = smul.addr %s162, 32
        %s164 = scalar_lea.vmem [#allocation6], %s163
        %s165 = smul.u32 2, %s24
        %s166 = smul.u32 %s25, 2
        %s167 = sadd.s32 %s166, %s24
        %s168 = smul.u32 2, %s167
        %p169 = scmp.eq.s32.totalorder %s25, 0
        // Predicated region
        $region29: #{tpu_custom_call.1} parent=23 // pred_check
          %p170 = pneg %p169
        $region30: #{tpu_custom_call.1} parent=23 // pred_check_branch
          %172 = sbr.rel (%p170) target = $region32
        $region31: #{tpu_custom_call.1} parent=23 // pred_region
          %v173 = vld [vmem:[%s146] sm:$0xff]
          %v174 = vld [vmem:[%s146 + $0x8] sm:$0xff]
          %v175 = vld [vmem:[%s146 + $0x10] sm:$0xff]
          %v176 = vld [vmem:[%s146 + $0x18] sm:$0xff]
          %vm177 = vcmask 130048
          %178 = vst.msk [vmem:[#allocation2] sm:$0xff] %vm177, %v173
          %179 = vst.msk [vmem:[#allocation2 + $0x8] sm:$0xff] %vm177, %v174
          %180 = vst.msk [vmem:[#allocation2 + $0x10] sm:$0xff] %vm177, %v175
          %181 = vst.msk [vmem:[#allocation2 + $0x18] sm:$0xff] %vm177, %v176
          %182 = vst.msk [vmem:[%s164] sm:$0xff] %vm177, %v173
          %183 = vst.msk [vmem:[%s164 + $0x8] sm:$0xff] %vm177, %v174
          %184 = vst.msk [vmem:[%s164 + $0x10] sm:$0xff] %vm177, %v175
          %185 = vst.msk [vmem:[%s164 + $0x18] sm:$0xff] %vm177, %v176
        $region32: #{tpu_custom_call.1} parent=23 // pred_fallthru
          _
        %p186 = scmp.ne.s32.totalorder %s25, 0
        // Predicated region
        $region33: #{tpu_custom_call.1} parent=23 // pred_check
          %p187 = pneg %p186
        $region34: #{tpu_custom_call.1} parent=23 // pred_check_branch
          %189 = sbr.rel (%p187) target = $region36
        $region35: #{tpu_custom_call.1} parent=23 // pred_region
          %v190 = vld [vmem:[#allocation2] sm:$0xff]
          %v191 = vld [vmem:[#allocation2 + $0x8] sm:$0xff]
          %v192 = vld [vmem:[#allocation2 + $0x10] sm:$0xff]
          %v193 = vld [vmem:[#allocation2 + $0x18] sm:$0xff]
          %vm198 = vcmask 1041408
          %v199 = vrot.slane %v190, 6
          %v200 = vrot.slane %v191, 6
          %v201 = vsel %vm198, %v199, %v200
          %v202 = vrot.slane %v192, 6
          %v203 = vrot.slane %v193, 6
          %v204 = vsel %vm198, %v202, %v203
          %v211 = vsel %vm198, -inf, %v199
          %v212 = vsel %vm198, -inf, %v202
          %v213 = vsel %vm198, %v200, -inf
          %v214 = vsel %vm198, %v203, -inf
          %vm219 = vcmask 1046528
          %v220 = vrot.slane %v211, 1
          %v221 = vrot.slane %v201, 1
          %v222 = vsel %vm219, %v220, %v221
          %v223 = vrot.slane %v213, 1
          %v224 = vsel %vm219, %v221, %v223
          %v225 = vrot.slane %v212, 1
          %v226 = vrot.slane %v204, 1
          %v227 = vsel %vm219, %v225, %v226
          %v228 = vrot.slane %v214, 1
          %v229 = vsel %vm219, %v226, %v228
          %v234 = vmax.f32 %v211, %v222
          %v235 = vmax.f32 %v201, %v224
          %v236 = vmax.f32 %v212, %v227
          %v237 = vmax.f32 %v204, %v229
          %v240 = vmax.f32 %v213, %v223
          %v241 = vmax.f32 %v214, %v228
          %vm248 = vcmask 1045504
          %v249 = vrot.slane %v234, 2
          %v250 = vrot.slane %v235, 2
          %v251 = vsel %vm248, %v249, %v250
          %v252 = vrot.slane %v240, 2
          %v253 = vsel %vm248, %v250, %v252
          %v254 = vrot.slane %v236, 2
          %v255 = vrot.slane %v237, 2
          %v256 = vsel %vm248, %v254, %v255
          %v257 = vrot.slane %v241, 2
          %v258 = vsel %vm248, %v255, %v257
          %v263 = vmax.f32 %v234, %v251
          %v264 = vmax.f32 %v235, %v253
          %v265 = vmax.f32 %v236, %v256
          %v266 = vmax.f32 %v237, %v258
          %vm267 = vcmask 1043456
          %v268 = vrot.slane %v211, 4
          %v269 = vrot.slane %v201, 4
          %v270 = vsel %vm267, %v268, %v269
          %v271 = vrot.slane %v213, 4
          %v272 = vsel %vm267, %v269, %v271
          %v273 = vrot.slane %v212, 4
          %v274 = vrot.slane %v204, 4
          %v275 = vsel %vm267, %v273, %v274
          %v276 = vrot.slane %v214, 4
          %v277 = vsel %vm267, %v274, %v276
          %v282 = vmax.f32 %v263, %v270
          %v283 = vmax.f32 %v264, %v272
          %v284 = vmax.f32 %v265, %v275
          %v285 = vmax.f32 %v266, %v277
          %v286 = vlaneseq
          %v287 = vand.u32 %v286, 127
          %vm288 = vcmask 1047680
          %289 = vrot.lane.b32.xlu0 %v282, 16
          %v290 = vpop.permute.xlu0 %289
          %v291 = vsel %vm288, %v290, %v282
          %292 = vrot.lane.b32.xlu0 %v283, 16
          %v293 = vpop.permute.xlu0 %292
          %v294 = vsel %vm288, %v293, %v283
          %295 = vrot.lane.b32.xlu0 %v284, 16
          %v296 = vpop.permute.xlu0 %295
          %v297 = vsel %vm288, %v296, %v284
          %298 = vrot.lane.b32.xlu0 %v285, 16
          %v299 = vpop.permute.xlu0 %298
          %v300 = vsel %vm288, %v299, %v285
          %301 = vrot.lane.b32.xlu0 %v291, 16
          %v302 = vpop.permute.xlu0 %301
          %303 = vrot.lane.b32.xlu0 %v294, 16
          %v304 = vpop.permute.xlu0 %303
          %305 = vrot.lane.b32.xlu0 %v297, 16
          %v306 = vpop.permute.xlu0 %305
          %307 = vrot.lane.b32.xlu0 %v300, 16
          %v308 = vpop.permute.xlu0 %307
          %v309 = vsel %vm288, %v302, %v282
          %v310 = vsel %vm288, %v304, %v283
          %v311 = vsel %vm288, %v306, %v284
          %v312 = vsel %vm288, %v308, %v285
          %313 = vrot.lane.b32.xlu0 %v287, 16
          %v314 = vpop.permute.xlu0 %313
          %v315 = vsel %vm288, %v314, %v287
          %316 = vrot.lane.b32.xlu0 %v315, 16
          %v317 = vpop.permute.xlu0 %316
          %v318 = vsel %vm288, %v317, %v287
          %319 = vrot.lane.b32.xlu0 %v287, 15
          %v320 = vpop.permute.xlu0 %319
          %v321 = vsub.s32 %v318, %v320
          %vm322 = vcmp.lt.s32.totalorder %v321, 0
          %v323 = vsub.s32 0, %v321
          %v324 = vsel %vm322, %v323, %v321
          %vm325 = vcmp.le.s32.totalorder %v324, 2
          %v326 = vsel %vm325, %v309, -inf
          %v327 = vsel %vm325, %v310, -inf
          %v328 = vsel %vm325, %v311, -inf
          %v329 = vsel %vm325, %v312, -inf
          %330 = vrot.lane.b32.xlu0 %v287, 1
          %v331 = vpop.permute.xlu0 %330
          %v332 = vsub.s32 %v318, %v331
          %vm333 = vcmp.lt.s32.totalorder %v332, 0
          %v334 = vsub.s32 0, %v332
          %v335 = vsel %vm333, %v334, %v332
          %vm336 = vcmp.le.s32.totalorder %v335, 2
          %v337 = vsel %vm336, %v309, -inf
          %v338 = vsel %vm336, %v310, -inf
          %v339 = vsel %vm336, %v311, -inf
          %v340 = vsel %vm336, %v312, -inf
          %341 = vrot.lane.b32.xlu0 %v287, 14
          %v342 = vpop.permute.xlu0 %341
          %v343 = vsub.s32 %v318, %v342
          %vm344 = vcmp.lt.s32.totalorder %v343, 0
          %v345 = vsub.s32 0, %v343
          %v346 = vsel %vm344, %v345, %v343
          %vm347 = vcmp.le.s32.totalorder %v346, 2
          %v348 = vsel %vm347, %v309, -inf
          %v349 = vsel %vm347, %v310, -inf
          %v350 = vsel %vm347, %v311, -inf
          %v351 = vsel %vm347, %v312, -inf
          %352 = vrot.lane.b32.xlu0 %v287, 2
          %v353 = vpop.permute.xlu0 %352
          %v354 = vsub.s32 %v318, %v353
          %vm355 = vcmp.lt.s32.totalorder %v354, 0
          %v356 = vsub.s32 0, %v354
          %v357 = vsel %vm355, %v356, %v354
          %vm358 = vcmp.le.s32.totalorder %v357, 2
          %v359 = vsel %vm358, %v309, -inf
          %v360 = vsel %vm358, %v310, -inf
          %v361 = vsel %vm358, %v311, -inf
          %v362 = vsel %vm358, %v312, -inf
          %367 = vrot.lane.b32.xlu0 %v326, 113
          %v368 = vpop.permute.xlu0 %367
          %369 = vrot.lane.b32.xlu0 %v327, 113
          %v370 = vpop.permute.xlu0 %369
          %371 = vrot.lane.b32.xlu0 %v328, 113
          %v372 = vpop.permute.xlu0 %371
          %373 = vrot.lane.b32.xlu0 %v329, 113
          %v374 = vpop.permute.xlu0 %373
          %v379 = vmax.f32 %v282, %v368
          %v380 = vmax.f32 %v283, %v370
          %v381 = vmax.f32 %v284, %v372
          %v382 = vmax.f32 %v285, %v374
          %387 = vrot.lane.b32.xlu0 %v348, 115
          %v388 = vpop.permute.xlu0 %387
          %389 = vrot.lane.b32.xlu0 %v349, 115
          %v390 = vpop.permute.xlu0 %389
          %391 = vrot.lane.b32.xlu0 %v350, 115
          %v392 = vpop.permute.xlu0 %391
          %393 = vrot.lane.b32.xlu0 %v351, 115
          %v394 = vpop.permute.xlu0 %393
          %v399 = vmax.f32 %v337, %v388
          %v400 = vmax.f32 %v338, %v390
          %v401 = vmax.f32 %v339, %v392
          %v402 = vmax.f32 %v340, %v394
          %407 = vrot.lane.b32.xlu0 %v399, 127
          %v408 = vpop.permute.xlu0 %407
          %409 = vrot.lane.b32.xlu0 %v400, 127
          %v410 = vpop.permute.xlu0 %409
          %411 = vrot.lane.b32.xlu0 %v401, 127
          %v412 = vpop.permute.xlu0 %411
          %413 = vrot.lane.b32.xlu0 %v402, 127
          %v414 = vpop.permute.xlu0 %413
          %v419 = vmax.f32 %v379, %v408
          %v420 = vmax.f32 %v380, %v410
          %v421 = vmax.f32 %v381, %v412
          %v422 = vmax.f32 %v382, %v414
          %427 = vrot.lane.b32.xlu0 %v359, 126
          %v428 = vpop.permute.xlu0 %427
          %429 = vrot.lane.b32.xlu0 %v360, 126
          %v430 = vpop.permute.xlu0 %429
          %431 = vrot.lane.b32.xlu0 %v361, 126
          %v432 = vpop.permute.xlu0 %431
          %433 = vrot.lane.b32.xlu0 %v362, 126
          %v434 = vpop.permute.xlu0 %433
          %v439 = vmax.f32 %v419, %v428
          %v440 = vmax.f32 %v420, %v430
          %v441 = vmax.f32 %v421, %v432
          %v442 = vmax.f32 %v422, %v434
          %vm443 = vcmask 130048
          %444 = vst.msk [vmem:[#allocation2] sm:$0xff] %vm443, %v439
          %445 = vst.msk [vmem:[#allocation2 + $0x8] sm:$0xff] %vm443, %v440
          %446 = vst.msk [vmem:[#allocation2 + $0x10] sm:$0xff] %vm443, %v441
          %447 = vst.msk [vmem:[#allocation2 + $0x18] sm:$0xff] %vm443, %v442
          %448 = vst.msk [vmem:[%s164] sm:$0xff] %vm443, %v439
          %449 = vst.msk [vmem:[%s164 + $0x8] sm:$0xff] %vm443, %v440
          %450 = vst.msk [vmem:[%s164 + $0x10] sm:$0xff] %vm443, %v441
          %451 = vst.msk [vmem:[%s164 + $0x18] sm:$0xff] %vm443, %v442
        $region36: #{tpu_custom_call.1} parent=23 // pred_fallthru
          _
        %s452 = sand.u32 %s79, 1
        %s453 = scalar_lea.sflag [#allocation5], %s452
        %s454 = sand.u32 %s79, 1
        %s455 = smul.addr %s454, 32
        %s456 = scalar_lea.vmem [#allocation6], %s455
        // Predicated region
        $region37: #{tpu_custom_call.1} parent=23 // pred_check
          %p457 = pneg %p89
        $region38: #{tpu_custom_call.1} parent=23 // pred_check_branch
          %459 = sbr.rel (%p457) target = $region40
        $region39: #{tpu_custom_call.1} parent=23 // pred_region
          %s460 = smul.u32 %s25, 2
          %s461 = sadd.s32 %s460, %s24
          %s462 = smul.u32 2, %s461
          %s464 = ssub.s32 512, 512
          %465 = vsyncadd %s453, %s464
          %s466 = smul.addr %s462, 2
          %s467 = smul.addr %s23, 32
          %s468 = sadd.s32 %s466, %s467
          %s469 = smul.addr %s468, 128
          %s470 = scalar_lea.hbm %s1, %s469
          %s471 = sshll.u32 %s456, 4
          %s472 = int_to_ptr.vmem [resolvable:$true] %s471
          %477 = dma.vmem_to_hbm [thread:$0]  %s472, 512, %s470, %s453, 128, 128, 8
        $region40: #{tpu_custom_call.1} parent=23 // pred_fallthru
          _
      $region24: #{tpu_custom_call.1} parent=5 // pred_fallthru
        _
      %p478 = scmp.le.s32.totalorder 2, %s13
      // Predicated region
      $region41: #{tpu_custom_call.1} parent=5 // pred_check
        %p479 = pneg %p478
      $region42: #{tpu_custom_call.1} parent=5 // pred_check_branch
        %481 = sbr.rel (%p479) target = $region44
      $region43: #{tpu_custom_call.1} parent=5 // pred_region
        %s482 = ssub.s32 %s13, 2
        // Predicated region
        $region45: #{tpu_custom_call.1} parent=43 // pred_check
          %p483 = pneg %p95
        $region46: #{tpu_custom_call.1} parent=43 // pred_check_branch
          %485 = sbr.rel (%p483) target = $region48
        $region47: #{tpu_custom_call.1} parent=43 // pred_region
          %s486 = sand.u32 %s80, 1
          %s487 = scalar_lea.sflag [#allocation5], %s486
          %s488 = sand.u32 %s80, 1
          %s489 = smul.addr %s488, 32
          %s490 = scalar_lea.vmem [#allocation6], %s489
          %491 = dma.done %s487, 512
        $region48: #{tpu_custom_call.1} parent=43 // pred_fallthru
          _
      $region44: #{tpu_custom_call.1} parent=5 // pred_fallthru
        _
    $region6: #{tpu_custom_call.1} parent=1 // loop_footer
      %s17 = sadd.s32 1, %s13
    $region7: #{tpu_custom_call.1} parent=1 // loop_footer_branch
      %12 = sbr.rel target = $region3
    $region8: #{tpu_custom_call.1} parent=1 // loop_exit
      _
    %492 = vsyncpa [#allocation4], 1
    %s493 = scalar_lea.sflag [#allocation4], 1
    %494 = vsyncpa %s493, 1
    %495 = vsyncpa [#allocation5], 1
    %s496 = scalar_lea.sflag [#allocation5], 1
    %497 = vsyncpa %s496, 1

</llo_original>
